<compile_context>
chip_gen: v5e
topology: v5e:2x2
jax: 0.10.0
libtpu: 0.0.40
codegen_flags: <defaults>
</compile_context>

<pallas_src>
import jax
import jax.numpy as jnp
from jax.experimental import pallas as pl
from jax.experimental.pallas import tpu as pltpu


def _lal_kernel(x_ref, w1_ref, b1_ref, w2_ref, b2_ref, w3_ref, b3_ref, o_ref):
    # x_ref: (N, Cin, St) bf16    wK_ref: (CoutK, CinK) f32    bK_ref: (CoutK, 1) f32
    # o_ref: (N, Cout, St) bf16   -- spatial on lanes, channels on sublanes.
    w1 = w1_ref[...]
    b1 = b1_ref[...]
    w2 = w2_ref[...]
    b2 = b2_ref[...]
    w3 = w3_ref[...]
    b3 = b3_ref[...]
    n_batch = x_ref.shape[0]
    # Batch is small and static: unroll.  Intermediates stay f32 in VMEM.
    for n in range(n_batch):
        x = x_ref[n].astype(jnp.float32)                             # (Cin, St)
        h = jnp.dot(w1, x, preferred_element_type=jnp.float32)
        h = jnp.maximum(h + b1, 0.0)                                 # conv1+BN+ReLU
        h = jnp.dot(w2, h, preferred_element_type=jnp.float32)
        h = jnp.maximum(h + b2, 0.0)                                 # conv2+BN+ReLU
        h = jnp.dot(w3, h, preferred_element_type=jnp.float32)
        h = h + b3                                                   # conv3+BN (no ReLU)
        o_ref[n] = h.astype(o_ref.dtype)


def _round_up(x, m):
    return (x + m - 1) // m * m


def _fold_bn(w, b, gamma, beta, mean, var, eps=1e-5):
    """Fold eval-mode BatchNorm into the preceding 1x1 conv.

    w: (Cout, Cin) matmul weight (conv-layout), b: (Cout,) conv bias.
    Returns folded (w', b') with y = w' @ x + b'; b' is (Cout, 1) for
    lane-broadcast inside the kernel.
    """
    scale = gamma / jnp.sqrt(var + eps)            # (Cout,)
    w_f = w * scale[:, None]
    b_f = (b - mean) * scale + beta
    return w_f, b_f.reshape(-1, 1)


def _pick_spatial_tile(HW, N, Cin, Cout, act_bytes, s_tile_max,
                       vmem_budget=24 * 1024 * 1024):
    """Lane-dense spatial tile: multiple of 128, VMEM-budgeted, >=2 tiles if possible."""
    # Double-buffered in+out blocks (whole batch) + a few f32 intermediates.
    per_lane = 2 * N * (Cin + Cout) * act_bytes + 4 * 4 * Cout
    st_cap = max(128, (vmem_budget // per_lane) // 128 * 128)
    st = max(128, min(s_tile_max, st_cap))
    if HW > 128:
        # Keep >=2 spatial tiles so both v7x TensorCores get work.
        st = min(st, _round_up(-(-HW // 2), 128))
    st = min(st, _round_up(HW, 128))
    return st


def location_adaptive_learner(x_nchw, params, nclass, *, s_tile=16384,
                              act_dtype=jnp.bfloat16):
    """x_nchw: (N, Cin, H, W) -> (N, nclass, Cout//nclass, H, W) in act_dtype."""
    N, Cin, H, W = x_nchw.shape
    w1, b1, w2, b2, w3, b3 = params
    Cout = w3.shape[0]
    HW = H * W

    act_bytes = jnp.dtype(act_dtype).itemsize
    st = _pick_spatial_tile(HW, N, Cin, Cout, act_bytes, s_tile)
    num_tiles = pl.cdiv(HW, st)

    # NCHW is already (N, C, H*W) contiguous: no transpose, no padding, no slice.
    x3 = x_nchw.reshape(N, Cin, HW).astype(act_dtype)

    const = lambda s: (0, 0)

    flops = 2 * N * HW * Cout * (Cin + 2 * Cout)
    bytes_accessed = (N * HW * (Cin + Cout) * act_bytes
                      + 4 * (Cin * Cout + 2 * Cout * Cout + 3 * Cout))

    out3 = pl.pallas_call(
        _lal_kernel,
        out_shape=jax.ShapeDtypeStruct((N, Cout, HW), act_dtype),
        grid_spec=pltpu.PrefetchScalarGridSpec(
            num_scalar_prefetch=0,
            grid=(num_tiles,),
            in_specs=[
                pl.BlockSpec((N, Cin, st), lambda s: (0, 0, s)),
                pl.BlockSpec((Cout, Cin), const),   # w1 (grid-invariant, tiny)
                pl.BlockSpec((Cout, 1), const),     # b1
                pl.BlockSpec((Cout, Cout), const),  # w2
                pl.BlockSpec((Cout, 1), const),     # b2
                pl.BlockSpec((Cout, Cout), const),  # w3
                pl.BlockSpec((Cout, 1), const),     # b3
            ],
            out_specs=pl.BlockSpec((N, Cout, st), lambda s: (0, 0, s)),
        ),
        compiler_params=pltpu.CompilerParams(
            dimension_semantics=("parallel",)),
        cost_estimate=pl.CostEstimate(
            flops=flops, transcendentals=0, bytes_accessed=bytes_accessed),
    )(x3, w1, b1, w2, b2, w3, b3)

    # (N, Cout, H*W) -> (N, nclass, Cout//nclass, H, W): pure reshape, no transpose.
    return out3.reshape(N, nclass, Cout // nclass, H, W)


def make_params(key, nclass, in_channels, out_channels):
    """Deterministic synthetic parameters; BN folded into conv weight/bias (f32)."""
    ks = jax.random.split(key, 12)

    def conv_bn(kw, kb, kg, kbeta, cin, cout):
        w = jax.random.normal(kw, (cout, cin), jnp.float32) * 0.1   # (Cout, Cin)
        b = jax.random.normal(kb, (cout,), jnp.float32) * 0.1
        gamma = 1.0 + 0.1 * jax.random.normal(kg, (cout,), jnp.float32)
        beta = 0.1 * jax.random.normal(kbeta, (cout,), jnp.float32)
        mean = 0.05 * jnp.arange(cout, dtype=jnp.float32)
        var = 0.5 + 0.01 * jnp.arange(cout, dtype=jnp.float32)
        return _fold_bn(w, b, gamma, beta, mean, var)

    w1, b1 = conv_bn(ks[0], ks[1], ks[2], ks[3], in_channels, out_channels)
    w2, b2 = conv_bn(ks[4], ks[5], ks[6], ks[7], out_channels, out_channels)
    w3, b3 = conv_bn(ks[8], ks[9], ks[10], ks[11], out_channels, out_channels)
    return (w1, b1, w2, b2, w3, b3)


if __name__ == "__main__":
    # Small shapes: nclass=4, in_channels = out_channels = nclass*4 = 16
    nclass = 4
    in_channels = 16
    out_channels = nclass * 4     # 16
    N, H, W = 2, 16, 16

    key = jax.random.PRNGKey(0)
    kx, kp = jax.random.split(key)
    # Activations live in bf16 in HBM (bandwidth-bound kernel).
    x = jax.random.normal(kx, (N, in_channels, H, W), jnp.float32).astype(jnp.bfloat16)
    params = make_params(kp, nclass, in_channels, out_channels)

    out = location_adaptive_learner(x, params, nclass)
    out = jax.block_until_ready(out)

    # Pure-JAX f32 reference of the same math, from the same bf16 input.
    def ref(x_in):
        w1, b1, w2, b2, w3, b3 = params
        r = x_in.astype(jnp.float32).reshape(N, in_channels, H * W)
        r = jnp.maximum(jnp.einsum('oc,ncs->nos', w1, r) + b1[None], 0.0)
        r = jnp.maximum(jnp.einsum('oc,ncs->nos', w2, r) + b2[None], 0.0)
        r = jnp.einsum('oc,ncs->nos', w3, r) + b3[None]
        return r.reshape(N, nclass, out_channels // nclass, H, W)

    assert out.shape == (N, nclass, out_channels // nclass, H, W)
    assert out.dtype == jnp.bfloat16
    # Tolerance covers bf16 rounding of the input and of the final output.
    assert jnp.allclose(out.astype(jnp.float32), ref(x), atol=2e-2, rtol=5e-2)
    print("KERNEL_OK")
</pallas_src>

<mosaic_0001>
module attributes {stable_mosaic.version = 11 : i64} {
  func.func @_lal_kernel(%arg0: i32, %arg1: memref<2x16x128xbf16, #tpu.memory_space<vmem>>, %arg2: memref<16x16xf32, #tpu.memory_space<vmem>>, %arg3: memref<16x1xf32, #tpu.memory_space<vmem>>, %arg4: memref<16x16xf32, #tpu.memory_space<vmem>>, %arg5: memref<16x1xf32, #tpu.memory_space<vmem>>, %arg6: memref<16x16xf32, #tpu.memory_space<vmem>>, %arg7: memref<16x1xf32, #tpu.memory_space<vmem>>, %arg8: memref<2x16x128xbf16, #tpu.memory_space<vmem>>) attributes {dimension_semantics = [#tpu.dimension_semantics<parallel>], iteration_bounds = array<i64: 2>, scalar_prefetch = 0 : i64, scratch_operands = 0 : i64, tpu.core_type = #tpu.core_type<tc>, window_params = [{transform_indices = @transform_0, window_bounds = array<i64: 2, 16, 128>}, {pipeline_mode = #tpu.pipeline_mode<synchronous>, transform_indices = @transform_1, window_bounds = array<i64: 16, 16>}, {pipeline_mode = #tpu.pipeline_mode<synchronous>, transform_indices = @transform_2, window_bounds = array<i64: 16, 1>}, {pipeline_mode = #tpu.pipeline_mode<synchronous>, transform_indices = @transform_3, window_bounds = array<i64: 16, 16>}, {pipeline_mode = #tpu.pipeline_mode<synchronous>, transform_indices = @transform_4, window_bounds = array<i64: 16, 1>}, {pipeline_mode = #tpu.pipeline_mode<synchronous>, transform_indices = @transform_5, window_bounds = array<i64: 16, 16>}, {pipeline_mode = #tpu.pipeline_mode<synchronous>, transform_indices = @transform_6, window_bounds = array<i64: 16, 1>}, {transform_indices = @transform_7, window_bounds = array<i64: 2, 16, 128>}]} {
    %c0 = arith.constant 0 : index
    %c0_0 = arith.constant 0 : index
    %0 = vector.load %arg2[%c0, %c0_0] : memref<16x16xf32, #tpu.memory_space<vmem>>, vector<16x16xf32>
    %c0_1 = arith.constant 0 : index
    %c0_2 = arith.constant 0 : index
    %1 = vector.load %arg3[%c0_1, %c0_2] : memref<16x1xf32, #tpu.memory_space<vmem>>, vector<16x1xf32>
    %c0_3 = arith.constant 0 : index
    %c0_4 = arith.constant 0 : index
    %2 = vector.load %arg4[%c0_3, %c0_4] : memref<16x16xf32, #tpu.memory_space<vmem>>, vector<16x16xf32>
    %c0_5 = arith.constant 0 : index
    %c0_6 = arith.constant 0 : index
    %3 = vector.load %arg5[%c0_5, %c0_6] : memref<16x1xf32, #tpu.memory_space<vmem>>, vector<16x1xf32>
    %c0_7 = arith.constant 0 : index
    %c0_8 = arith.constant 0 : index
    %4 = vector.load %arg6[%c0_7, %c0_8] : memref<16x16xf32, #tpu.memory_space<vmem>>, vector<16x16xf32>
    %c0_9 = arith.constant 0 : index
    %c0_10 = arith.constant 0 : index
    %5 = vector.load %arg7[%c0_9, %c0_10] : memref<16x1xf32, #tpu.memory_space<vmem>>, vector<16x1xf32>
    %c0_11 = arith.constant 0 : index
    %c0_12 = arith.constant 0 : index
    %c0_13 = arith.constant 0 : index
    %6 = vector.load %arg1[%c0_11, %c0_12, %c0_13] : memref<2x16x128xbf16, #tpu.memory_space<vmem>>, vector<1x16x128xbf16>
    %7 = vector.shape_cast %6 : vector<1x16x128xbf16> to vector<16x128xbf16>
    %8 = arith.extf %7 : vector<16x128xbf16> to vector<16x128xf32>
    %cst = arith.constant dense<0.000000e+00> : vector<16x128xf32>
    %9 = tpu.matmul %0, %8, %cst {dimension_numbers = #tpu.dot_dimension_numbers<[1], [0], [0], [1], [0, 0, 1, 1], [], []>} : vector<16x16xf32>, vector<16x128xf32>, vector<16x128xf32> -> vector<16x128xf32>
    %10 = vector.broadcast %1 : vector<16x1xf32> to vector<16x128xf32>
    %11 = arith.addf %9, %10 : vector<16x128xf32>
    %cst_14 = arith.constant 0.000000e+00 : f32
    %12 = vector.broadcast %cst_14 : f32 to vector<16x128xf32>
    %13 = arith.maximumf %11, %12 : vector<16x128xf32>
    %cst_15 = arith.constant dense<0.000000e+00> : vector<16x128xf32>
    %14 = tpu.matmul %2, %13, %cst_15 {dimension_numbers = #tpu.dot_dimension_numbers<[1], [0], [0], [1], [0, 0, 1, 1], [], []>} : vector<16x16xf32>, vector<16x128xf32>, vector<16x128xf32> -> vector<16x128xf32>
    %15 = vector.broadcast %3 : vector<16x1xf32> to vector<16x128xf32>
    %16 = arith.addf %14, %15 : vector<16x128xf32>
    %cst_16 = arith.constant 0.000000e+00 : f32
    %17 = vector.broadcast %cst_16 : f32 to vector<16x128xf32>
    %18 = arith.maximumf %16, %17 : vector<16x128xf32>
    %cst_17 = arith.constant dense<0.000000e+00> : vector<16x128xf32>
    %19 = tpu.matmul %4, %18, %cst_17 {dimension_numbers = #tpu.dot_dimension_numbers<[1], [0], [0], [1], [0, 0, 1, 1], [], []>} : vector<16x16xf32>, vector<16x128xf32>, vector<16x128xf32> -> vector<16x128xf32>
    %20 = vector.broadcast %5 : vector<16x1xf32> to vector<16x128xf32>
    %21 = arith.addf %19, %20 : vector<16x128xf32>
    %22 = arith.truncf %21 : vector<16x128xf32> to vector<16x128xbf16>
    %c0_18 = arith.constant 0 : index
    %c0_19 = arith.constant 0 : index
    %c0_20 = arith.constant 0 : index
    %23 = vector.load %arg8[%c0_18, %c0_19, %c0_20] : memref<2x16x128xbf16, #tpu.memory_space<vmem>>, vector<1x16x128xbf16>
    %24 = vector.shape_cast %23 : vector<1x16x128xbf16> to vector<16x128xbf16>
    %25 = vector.shape_cast %22 : vector<16x128xbf16> to vector<1x16x128xbf16>
    tpu.vector_store %arg8[%c0_18, %c0_19, %c0_20], %25 {strides = array<i32>} : memref<2x16x128xbf16, #tpu.memory_space<vmem>>, vector<1x16x128xbf16>,
    %c1 = arith.constant 1 : index
    %c0_21 = arith.constant 0 : index
    %c0_22 = arith.constant 0 : index
    %26 = vector.load %arg1[%c1, %c0_21, %c0_22] : memref<2x16x128xbf16, #tpu.memory_space<vmem>>, vector<1x16x128xbf16>
    %27 = vector.shape_cast %26 : vector<1x16x128xbf16> to vector<16x128xbf16>
    %28 = arith.extf %27 : vector<16x128xbf16> to vector<16x128xf32>
    %cst_23 = arith.constant dense<0.000000e+00> : vector<16x128xf32>
    %29 = tpu.matmul %0, %28, %cst_23 {dimension_numbers = #tpu.dot_dimension_numbers<[1], [0], [0], [1], [0, 0, 1, 1], [], []>} : vector<16x16xf32>, vector<16x128xf32>, vector<16x128xf32> -> vector<16x128xf32>
    %30 = vector.broadcast %1 : vector<16x1xf32> to vector<16x128xf32>
    %31 = arith.addf %29, %30 : vector<16x128xf32>
    %cst_24 = arith.constant 0.000000e+00 : f32
    %32 = vector.broadcast %cst_24 : f32 to vector<16x128xf32>
    %33 = arith.maximumf %31, %32 : vector<16x128xf32>
    %cst_25 = arith.constant dense<0.000000e+00> : vector<16x128xf32>
    %34 = tpu.matmul %2, %33, %cst_25 {dimension_numbers = #tpu.dot_dimension_numbers<[1], [0], [0], [1], [0, 0, 1, 1], [], []>} : vector<16x16xf32>, vector<16x128xf32>, vector<16x128xf32> -> vector<16x128xf32>
    %35 = vector.broadcast %3 : vector<16x1xf32> to vector<16x128xf32>
    %36 = arith.addf %34, %35 : vector<16x128xf32>
    %cst_26 = arith.constant 0.000000e+00 : f32
    %37 = vector.broadcast %cst_26 : f32 to vector<16x128xf32>
    %38 = arith.maximumf %36, %37 : vector<16x128xf32>
    %cst_27 = arith.constant dense<0.000000e+00> : vector<16x128xf32>
    %39 = tpu.matmul %4, %38, %cst_27 {dimension_numbers = #tpu.dot_dimension_numbers<[1], [0], [0], [1], [0, 0, 1, 1], [], []>} : vector<16x16xf32>, vector<16x128xf32>, vector<16x128xf32> -> vector<16x128xf32>
    %40 = vector.broadcast %5 : vector<16x1xf32> to vector<16x128xf32>
    %41 = arith.addf %39, %40 : vector<16x128xf32>
    %42 = arith.truncf %41 : vector<16x128xf32> to vector<16x128xbf16>
    %c1_28 = arith.constant 1 : index
    %c0_29 = arith.constant 0 : index
    %c0_30 = arith.constant 0 : index
    %43 = vector.load %arg8[%c1_28, %c0_29, %c0_30] : memref<2x16x128xbf16, #tpu.memory_space<vmem>>, vector<1x16x128xbf16>
    %44 = vector.shape_cast %43 : vector<1x16x128xbf16> to vector<16x128xbf16>
    %45 = vector.shape_cast %42 : vector<16x128xbf16> to vector<1x16x128xbf16>
    tpu.vector_store %arg8[%c1_28, %c0_29, %c0_30], %45 {strides = array<i32>} : memref<2x16x128xbf16, #tpu.memory_space<vmem>>, vector<1x16x128xbf16>,
    return
  }
  func.func @transform_0(%arg0: i32) -> (i32, i32, i32) {
    %c0_i32 = arith.constant 0 : i32
    %c0_i32_0 = arith.constant 0 : i32
    %c0_i32_1 = arith.constant 0 : i32
    return %c0_i32, %c0_i32_0, %arg0 : i32, i32, i32
  }
  func.func @transform_1(%arg0: i32) -> (i32, i32) {
    %c0_i32 = arith.constant 0 : i32
    %c0_i32_0 = arith.constant 0 : i32
    %c0_i32_1 = arith.constant 0 : i32
    return %c0_i32, %c0_i32_0 : i32, i32
  }
  func.func @transform_2(%arg0: i32) -> (i32, i32) {
    %c0_i32 = arith.constant 0 : i32
    %c0_i32_0 = arith.constant 0 : i32
    %c0_i32_1 = arith.constant 0 : i32
    return %c0_i32, %c0_i32_0 : i32, i32
  }
  func.func @transform_3(%arg0: i32) -> (i32, i32) {
    %c0_i32 = arith.constant 0 : i32
    %c0_i32_0 = arith.constant 0 : i32
    %c0_i32_1 = arith.constant 0 : i32
    return %c0_i32, %c0_i32_0 : i32, i32
  }
  func.func @transform_4(%arg0: i32) -> (i32, i32) {
    %c0_i32 = arith.constant 0 : i32
    %c0_i32_0 = arith.constant 0 : i32
    %c0_i32_1 = arith.constant 0 : i32
    return %c0_i32, %c0_i32_0 : i32, i32
  }
  func.func @transform_5(%arg0: i32) -> (i32, i32) {
    %c0_i32 = arith.constant 0 : i32
    %c0_i32_0 = arith.constant 0 : i32
    %c0_i32_1 = arith.constant 0 : i32
    return %c0_i32, %c0_i32_0 : i32, i32
  }
  func.func @transform_6(%arg0: i32) -> (i32, i32) {
    %c0_i32 = arith.constant 0 : i32
    %c0_i32_0 = arith.constant 0 : i32
    %c0_i32_1 = arith.constant 0 : i32
    return %c0_i32, %c0_i32_0 : i32, i32
  }
  func.func @transform_7(%arg0: i32) -> (i32, i32, i32) {
    %c0_i32 = arith.constant 0 : i32
    %c0_i32_0 = arith.constant 0 : i32
    %c0_i32_1 = arith.constant 0 : i32
    return %c0_i32, %c0_i32_0, %arg0 : i32, i32, i32
  }
}

</mosaic_0001>

<llo_original>
// kernel: tpu_custom_call.1
$region0: #{tpu_custom_call.1}
  #allocation0 [shape = 'u32[]', space=smem, size = 0x4, offset = 0x4, fixed_abs, tag = 'smem constant byte address 0x4 - core index']
  #allocation1 [shape = 'u32[72,128]{1,0:T(1,128)}', space=vmem, size = 0x9000, scoped, tag = 'internal scratch']
  %s0 = inlined_call_operand.vmem [shape: bf16[2,16,256], index: 0, kind: input, shape index: {}]
  %s1 = inlined_call_operand.vmem [shape: f32[16,16], index: 1, kind: input, shape index: {}]
  %s2 = inlined_call_operand.vmem [shape: f32[16,1], index: 2, kind: input, shape index: {}]
  %s3 = inlined_call_operand.hbm [shape: f32[16,16], index: 3, kind: input, shape index: {}]
  %s4 = inlined_call_operand.vmem [shape: f32[16,1], index: 4, kind: input, shape index: {}]
  %s5 = inlined_call_operand.hbm [shape: f32[16,16], index: 5, kind: input, shape index: {}]
  %s6 = inlined_call_operand.vmem [shape: f32[16,1], index: 6, kind: input, shape index: {}]
  %s7 = inlined_call_operand.hbm [shape: bf16[2,16,256], index: 7, kind: output, shape index: {}]
  %s8 = sld [smem:[#allocation0]]
  $region110: #{tpu_custom_call.1} parent=0
    _
  %s10 = ssub.s32 1, %s8
  %s11 = scalar_select 0, %s10, %s8
  $region1: #{tpu_custom_call.1} parent=0
    #allocation2 [shape = 'u8[16384]{0}', space=vmem, size = 0x4000, scoped, tag = 'input window, operand 0']
    #allocation3 [shape = 'u8[8192]{0}', space=vmem, size = 0x2000, scoped, tag = 'input window, operand 3, single buffered']
    #allocation4 [shape = 's32[2]{0}', space=sflag, size = 0x8, scoped, tag = 'scoped memory for tpu_custom_call.1']
    #allocation5 [shape = 's32[2]{0}', space=sflag, size = 0x8, scoped, tag = 'scoped memory for tpu_custom_call.1']
    #allocation6 [shape = 'u8[8192]{0}', space=vmem, size = 0x2000, scoped, tag = 'input window, operand 5, single buffered']
    #allocation7 [shape = 's32[1]{0}', space=sflag, size = 0x4, scoped, tag = 'scoped memory for tpu_custom_call.1']
    #allocation8 [shape = 'u8[16384]{0}', space=vmem, size = 0x4000, scoped, tag = 'output window, operand 0']
    %12 = vsyncpa [#allocation4], 0
    %13 = vsyncpa [#allocation7], 0
    %14 = vsyncpa [#allocation5], 0
    %s15 = scalar_lea.sflag [#allocation5], 1
    %16 = vsyncpa %s15, 0
    loop: start=0, step=1, limit=4
    $region2: #{tpu_custom_call.1} parent=1 // loop_pre_header
      _
    $region3: #{tpu_custom_call.1} parent=1 // loop_header
      %s18 = sphi 0, %s22
      %p19 = scmp.ge.s32.totalorder %s18, 4
      %s28 = sphi 0, %s30
      %s31 = sphi 0, %s28
      %s32 = sphi 0, %s31
      %s48 = sphi 0, %s32
      %s52 = sphi 0, %s52
      %s54 = sphi 0, %s52
      %s55 = sphi 0, %s54
      %s69 = sphi 0, %s55
      %s73 = sphi 0, %s73
      %s75 = sphi 0, %s73
      %s76 = sphi 0, %s75
      %s90 = sphi 0, %s76
      %s94 = sphi 0, %s94
      %s96 = sphi 0, %s94
      %s97 = sphi 0, %s96
      %s111 = sphi 0, %s97
      %s115 = sphi 0, %s115
      %s117 = sphi 0, %s115
      %s118 = sphi 0, %s117
      %s132 = sphi 0, %s118
      %s136 = sphi 0, %s136
      %s138 = sphi 0, %s136
      %s139 = sphi 0, %s138
      %s153 = sphi 0, %s139
      %s157 = sphi 0, %s157
      %s159 = sphi 0, %s157
      %s160 = sphi 0, %s159
      %s174 = sphi 0, %s160
      %s180 = sphi 0, %s182
      %s183 = sphi 0, %s180
      %s184 = sphi 0, %s183
      %s200 = sphi 0, %s184
    $region4: #{tpu_custom_call.1} parent=1 // loop_header_branch
      %21 = sbr.rel (%p19) target = $region8
    $region5: #{tpu_custom_call.1} parent=1 // loop_body
      %s23 = ssub.s32 %s18, 1
      %s24 = ssub.s32 %s18, 2
      %s25 = sadd.s32 %s18, 1
      %s26 = ssub.s32 %s18, %s25
      %p27 = scmp.eq.s32.totalorder %s26, 0
      %s29 = sadd.s32 %s28, 1
      %s30 = scalar_select %p27, %s28, %s29
      %p33 = pneg %p27
      %p34 = scmp.eq.s32.totalorder %s18, 1
      %p35 = por %p33, %p34
      %p36 = scmp.ne.s32.totalorder %s28, %s31
      %p37 = scmp.eq.s32.totalorder %s18, 0
      %p38 = por %p36, %p37
      %p39 = scmp.ne.s32.totalorder %s28, %s31
      %p40 = scmp.eq.s32.totalorder %s23, 1
      %p41 = por %p39, %p40
      %p42 = scmp.ne.s32.totalorder %s31, %s32
      %p43 = scmp.eq.s32.totalorder %s23, 0
      %p44 = por %p42, %p43
      %p45 = scmp.ne.s32.totalorder %s31, %s32
      %p46 = scmp.eq.s32.totalorder %s24, 1
      %p47 = por %p45, %p46
      %p49 = scmp.ne.s32.totalorder %s32, %s48
      %p50 = scmp.eq.s32.totalorder %s24, 0
      %p51 = por %p49, %p50
      %s53 = sadd.s32 %s52, 1
      %p56 = scmp.eq.s32.totalorder %s18, 1
      %p57 = scmp.ne.s32.totalorder %s52, %s54
      %p58 = scmp.eq.s32.totalorder %s18, 0
      %p59 = por %p57, %p58
      %p60 = scmp.ne.s32.totalorder %s52, %s54
      %p61 = scmp.eq.s32.totalorder %s23, 1
      %p62 = por %p60, %p61
      %p63 = scmp.ne.s32.totalorder %s54, %s55
      %p64 = scmp.eq.s32.totalorder %s23, 0
      %p65 = por %p63, %p64
      %p66 = scmp.ne.s32.totalorder %s54, %s55
      %p67 = scmp.eq.s32.totalorder %s24, 1
      %p68 = por %p66, %p67
      %p70 = scmp.ne.s32.totalorder %s55, %s69
      %p71 = scmp.eq.s32.totalorder %s24, 0
      %p72 = por %p70, %p71
      %s74 = sadd.s32 %s73, 1
      %p77 = scmp.eq.s32.totalorder %s18, 1
      %p78 = scmp.ne.s32.totalorder %s73, %s75
      %p79 = scmp.eq.s32.totalorder %s18, 0
      %p80 = por %p78, %p79
      %p81 = scmp.ne.s32.totalorder %s73, %s75
      %p82 = scmp.eq.s32.totalorder %s23, 1
      %p83 = por %p81, %p82
      %p84 = scmp.ne.s32.totalorder %s75, %s76
      %p85 = scmp.eq.s32.totalorder %s23, 0
      %p86 = por %p84, %p85
      %p87 = scmp.ne.s32.totalorder %s75, %s76
      %p88 = scmp.eq.s32.totalorder %s24, 1
      %p89 = por %p87, %p88
      %p91 = scmp.ne.s32.totalorder %s76, %s90
      %p92 = scmp.eq.s32.totalorder %s24, 0
      %p93 = por %p91, %p92
      %s95 = sadd.s32 %s94, 1
      %p98 = scmp.eq.s32.totalorder %s18, 1
      %p99 = scmp.ne.s32.totalorder %s94, %s96
      %p100 = scmp.eq.s32.totalorder %s18, 0
      %p101 = por %p99, %p100
      %p102 = scmp.ne.s32.totalorder %s94, %s96
      %p103 = scmp.eq.s32.totalorder %s23, 1
      %p104 = por %p102, %p103
      %p105 = scmp.ne.s32.totalorder %s96, %s97
      %p106 = scmp.eq.s32.totalorder %s23, 0
      %p107 = por %p105, %p106
      %p108 = scmp.ne.s32.totalorder %s96, %s97
      %p109 = scmp.eq.s32.totalorder %s24, 1
      %p110 = por %p108, %p109
      %p112 = scmp.ne.s32.totalorder %s97, %s111
      %p113 = scmp.eq.s32.totalorder %s24, 0
      %p114 = por %p112, %p113
      %s116 = sadd.s32 %s115, 1
      %p119 = scmp.eq.s32.totalorder %s18, 1
      %p120 = scmp.ne.s32.totalorder %s115, %s117
      %p121 = scmp.eq.s32.totalorder %s18, 0
      %p122 = por %p120, %p121
      %p123 = scmp.ne.s32.totalorder %s115, %s117
      %p124 = scmp.eq.s32.totalorder %s23, 1
      %p125 = por %p123, %p124
      %p126 = scmp.ne.s32.totalorder %s117, %s118
      %p127 = scmp.eq.s32.totalorder %s23, 0
      %p128 = por %p126, %p127
      %p129 = scmp.ne.s32.totalorder %s117, %s118
      %p130 = scmp.eq.s32.totalorder %s24, 1
      %p131 = por %p129, %p130
      %p133 = scmp.ne.s32.totalorder %s118, %s132
      %p134 = scmp.eq.s32.totalorder %s24, 0
      %p135 = por %p133, %p134
      %s137 = sadd.s32 %s136, 1
      %p140 = scmp.eq.s32.totalorder %s18, 1
      %p141 = scmp.ne.s32.totalorder %s136, %s138
      %p142 = scmp.eq.s32.totalorder %s18, 0
      %p143 = por %p141, %p142
      %p144 = scmp.ne.s32.totalorder %s136, %s138
      %p145 = scmp.eq.s32.totalorder %s23, 1
      %p146 = por %p144, %p145
      %p147 = scmp.ne.s32.totalorder %s138, %s139
      %p148 = scmp.eq.s32.totalorder %s23, 0
      %p149 = por %p147, %p148
      %p150 = scmp.ne.s32.totalorder %s138, %s139
      %p151 = scmp.eq.s32.totalorder %s24, 1
      %p152 = por %p150, %p151
      %p154 = scmp.ne.s32.totalorder %s139, %s153
      %p155 = scmp.eq.s32.totalorder %s24, 0
      %p156 = por %p154, %p155
      %s158 = sadd.s32 %s157, 1
      %p161 = scmp.eq.s32.totalorder %s18, 1
      %p162 = scmp.ne.s32.totalorder %s157, %s159
      %p163 = scmp.eq.s32.totalorder %s18, 0
      %p164 = por %p162, %p163
      %p165 = scmp.ne.s32.totalorder %s157, %s159
      %p166 = scmp.eq.s32.totalorder %s23, 1
      %p167 = por %p165, %p166
      %p168 = scmp.ne.s32.totalorder %s159, %s160
      %p169 = scmp.eq.s32.totalorder %s23, 0
      %p170 = por %p168, %p169
      %p171 = scmp.ne.s32.totalorder %s159, %s160
      %p172 = scmp.eq.s32.totalorder %s24, 1
      %p173 = por %p171, %p172
      %p175 = scmp.ne.s32.totalorder %s160, %s174
      %p176 = scmp.eq.s32.totalorder %s24, 0
      %p177 = por %p175, %p176
      %s178 = ssub.s32 %s18, %s25
      %p179 = scmp.eq.s32.totalorder %s178, 0
      %s181 = sadd.s32 %s180, 1
      %s182 = scalar_select %p179, %s180, %s181
      %p185 = pneg %p179
      %p186 = scmp.eq.s32.totalorder %s18, 1
      %p187 = por %p185, %p186
      %p188 = scmp.ne.s32.totalorder %s180, %s183
      %p189 = scmp.eq.s32.totalorder %s18, 0
      %p190 = por %p188, %p189
      %p191 = scmp.ne.s32.totalorder %s180, %s183
      %p192 = scmp.eq.s32.totalorder %s23, 1
      %p193 = por %p191, %p192
      %p194 = scmp.ne.s32.totalorder %s183, %s184
      %p195 = scmp.eq.s32.totalorder %s23, 0
      %p196 = por %p194, %p195
      %p197 = scmp.ne.s32.totalorder %s183, %s184
      %p198 = scmp.eq.s32.totalorder %s24, 1
      %p199 = por %p197, %p198
      %p201 = scmp.ne.s32.totalorder %s184, %s200
      %p202 = scmp.eq.s32.totalorder %s24, 0
      %p203 = por %p201, %p202
      %p204 = scmp.le.s32.totalorder 1, %s18
      %p205 = scmp.lt.s32.totalorder %s18, 3
      %p206 = pnand %p204, %p205
      %p207 = pneg %p206
      // Predicated region
      $region9: #{tpu_custom_call.1} parent=5 // pred_check
        _
      $region10: #{tpu_custom_call.1} parent=5 // pred_check_branch
        %209 = sbr.rel (%p206) target = $region12
      $region11: #{tpu_custom_call.1} parent=5 // pred_region
        %s210 = ssub.s32 %s18, 1
        // Predicated region
        $region13: #{tpu_custom_call.1} parent=11 // pred_check
          %p211 = pneg %p65
        $region14: #{tpu_custom_call.1} parent=11 // pred_check_branch
          %213 = sbr.rel (%p211) target = $region16
        $region15: #{tpu_custom_call.1} parent=11 // pred_region
          _
        $region16: #{tpu_custom_call.1} parent=11 // pred_fallthru
          _
        // Predicated region
        $region17: #{tpu_custom_call.1} parent=11 // pred_check
          %p214 = pneg %p86
        $region18: #{tpu_custom_call.1} parent=11 // pred_check_branch
          %216 = sbr.rel (%p214) target = $region20
        $region19: #{tpu_custom_call.1} parent=11 // pred_region
          _
        $region20: #{tpu_custom_call.1} parent=11 // pred_fallthru
          _
        // Predicated region
        $region21: #{tpu_custom_call.1} parent=11 // pred_check
          %p217 = pneg %p107
        $region22: #{tpu_custom_call.1} parent=11 // pred_check_branch
          %219 = sbr.rel (%p217) target = $region24
        $region23: #{tpu_custom_call.1} parent=11 // pred_region
          %221 = vsyncadd [#allocation4], 0
          %s222 = sshll.u32 %s3, 4
          %s223 = int_to_ptr.hbm [resolvable:$true] %s222
          %s224 = sshll.u32 [#allocation3], 4
          %s225 = int_to_ptr.vmem [resolvable:$true] %s224
          %230 = dma.hbm_to_vmem [thread:$0]  %s223, 256, %s225, [#allocation4], 128, 128, 8
        $region24: #{tpu_custom_call.1} parent=11 // pred_fallthru
          _
        // Predicated region
        $region25: #{tpu_custom_call.1} parent=11 // pred_check
          %p231 = pneg %p128
        $region26: #{tpu_custom_call.1} parent=11 // pred_check_branch
          %233 = sbr.rel (%p231) target = $region28
        $region27: #{tpu_custom_call.1} parent=11 // pred_region
          _
        $region28: #{tpu_custom_call.1} parent=11 // pred_fallthru
          _
        // Predicated region
        $region29: #{tpu_custom_call.1} parent=11 // pred_check
          %p234 = pneg %p149
        $region30: #{tpu_custom_call.1} parent=11 // pred_check_branch
          %236 = sbr.rel (%p234) target = $region32
        $region31: #{tpu_custom_call.1} parent=11 // pred_region
          %238 = vsyncadd [#allocation7], 0
          %s239 = sshll.u32 %s5, 4
          %s240 = int_to_ptr.hbm [resolvable:$true] %s239
          %s241 = sshll.u32 [#allocation6], 4
          %s242 = int_to_ptr.vmem [resolvable:$true] %s241
          %247 = dma.hbm_to_vmem [thread:$0]  %s240, 256, %s242, [#allocation7], 128, 128, 8
        $region32: #{tpu_custom_call.1} parent=11 // pred_fallthru
          _
        // Predicated region
        $region33: #{tpu_custom_call.1} parent=11 // pred_check
          %p248 = pneg %p170
        $region34: #{tpu_custom_call.1} parent=11 // pred_check_branch
          %250 = sbr.rel (%p248) target = $region36
        $region35: #{tpu_custom_call.1} parent=11 // pred_region
          _
        $region36: #{tpu_custom_call.1} parent=11 // pred_fallthru
          _
      $region12: #{tpu_custom_call.1} parent=5 // pred_fallthru
        _
      %p251 = scmp.lt.s32.totalorder %s18, 2
      // Predicated region
      $region37: #{tpu_custom_call.1} parent=5 // pred_check
        %p252 = pneg %p251
      $region38: #{tpu_custom_call.1} parent=5 // pred_check_branch
        %254 = sbr.rel (%p252) target = $region40
      $region39: #{tpu_custom_call.1} parent=5 // pred_region
        // Predicated region
        $region41: #{tpu_custom_call.1} parent=39 // pred_check
          %p255 = pneg %p38
        $region42: #{tpu_custom_call.1} parent=39 // pred_check_branch
          %257 = sbr.rel (%p255) target = $region44
        $region43: #{tpu_custom_call.1} parent=39 // pred_region
          %s258 = sand.u32 %s28, 1
          %s259 = sand.u32 %s28, 1
          %s260 = smul.addr %s259, 16
          %s261 = scalar_lea.vmem [#allocation2], %s260
          %s262 = smul.addr %s18, 4
          %s263 = scalar_lea.vmem %s0, %s262
          // Predicated region
          $region45: #{tpu_custom_call.1} parent=43 // pred_check
            _
          $region46: #{tpu_custom_call.1} parent=43 // pred_check_branch
            %265 = sbr.rel (0) target = $region48
          $region47: #{tpu_custom_call.1} parent=43 // pred_region
            // Predicated region
            $region49: #{tpu_custom_call.1} parent=47 // pred_check
              _
            $region50: #{tpu_custom_call.1} parent=47 // pred_check_branch
              %267 = sbr.rel target = $region52
            $region51: #{tpu_custom_call.1} parent=47 // pred_region
              // Predicated region
              $region64: #{tpu_custom_call.1} parent=51 // pred_check
                _
              $region65: #{tpu_custom_call.1} parent=51 // pred_check_branch
                %289 = sbr.rel (0) target = $region67
              $region66: #{tpu_custom_call.1} parent=51 // pred_region
                loop: start=0, step=1, limit=1
                $region68: #{tpu_custom_call.1} parent=66 // loop_pre_header
                  _
                $region69: #{tpu_custom_call.1} parent=66 // loop_header
                  %s291 = sphi 0, %s295
                  %p292 = scmp.ge.s32.totalorder %s291, 1
                  %s296 = sphi %s263, %s263
                  %s297 = sphi %s261, %s261
                $region70: #{tpu_custom_call.1} parent=66 // loop_header_branch
                  %294 = sbr.rel (%p292) target = $region74
                $region71: #{tpu_custom_call.1} parent=66 // loop_body
                  _
                $region72: #{tpu_custom_call.1} parent=66 // loop_footer
                  %s295 = sadd.s32 1, %s291
                $region73: #{tpu_custom_call.1} parent=66 // loop_footer_branch
                  %290 = sbr.rel target = $region69
                $region74: #{tpu_custom_call.1} parent=66 // loop_exit
                  _
                %s299 = ssub.s32 16, 1
                loop: start=0, step=1, limit=1
                $region75: #{tpu_custom_call.1} parent=66 // loop_pre_header
                  _
                $region76: #{tpu_custom_call.1} parent=66 // loop_header
                  %s301 = sphi 0, %s305
                  %p302 = scmp.ge.s32.totalorder %s301, 1
                  %s306 = sphi %s263, %s263
                  %s307 = sphi %s261, %s261
                $region77: #{tpu_custom_call.1} parent=66 // loop_header_branch
                  %304 = sbr.rel (%p302) target = $region81
                $region78: #{tpu_custom_call.1} parent=66 // loop_body
                  %v308 = vld [vmem:[%s306] sm:%s299]
                  %309 = vst [vmem:[%s307] sm:%s299] %v308
                  %v310 = vld [vmem:[%s306 + $0x8] sm:%s299]
                  %311 = vst [vmem:[%s307 + $0x4] sm:%s299] %v310
                  %v312 = vld [vmem:[%s306 + $0x10] sm:%s299]
                  %313 = vst [vmem:[%s307 + $0x8] sm:%s299] %v312
                  %v314 = vld [vmem:[%s306 + $0x18] sm:%s299]
                  %315 = vst [vmem:[%s307 + $0xc] sm:%s299] %v314
                $region79: #{tpu_custom_call.1} parent=66 // loop_footer
                  %s305 = sadd.s32 1, %s301
                $region80: #{tpu_custom_call.1} parent=66 // loop_footer_branch
                  %300 = sbr.rel target = $region76
                $region81: #{tpu_custom_call.1} parent=66 // loop_exit
                  _
              $region67: #{tpu_custom_call.1} parent=51 // pred_fallthru
                _
            $region52: #{tpu_custom_call.1} parent=47 // pred_fallthru
              _
            // Predicated region
            $region53: #{tpu_custom_call.1} parent=47 // pred_check
              _
            $region54: #{tpu_custom_call.1} parent=47 // pred_check_branch
              %269 = sbr.rel (0) target = $region56
            $region55: #{tpu_custom_call.1} parent=47 // pred_region
              %s271 = ssub.s32 16, 1
              loop: start=0, step=1, limit=1
              $region57: #{tpu_custom_call.1} parent=55 // loop_pre_header
                _
              $region58: #{tpu_custom_call.1} parent=55 // loop_header
                %s273 = sphi 0, %s277
                %p274 = scmp.ge.s32.totalorder %s273, 1
                %s278 = sphi %s263, %s263
                %s279 = sphi %s261, %s261
              $region59: #{tpu_custom_call.1} parent=55 // loop_header_branch
                %276 = sbr.rel (%p274) target = $region63
              $region60: #{tpu_custom_call.1} parent=55 // loop_body
                %v280 = vld [vmem:[%s278] sm:%s271]
                %281 = vst [vmem:[%s279] sm:%s271] %v280
                %v282 = vld [vmem:[%s278 + $0x8] sm:%s271]
                %283 = vst [vmem:[%s279 + $0x4] sm:%s271] %v282
                %v284 = vld [vmem:[%s278 + $0x10] sm:%s271]
                %285 = vst [vmem:[%s279 + $0x8] sm:%s271] %v284
                %v286 = vld [vmem:[%s278 + $0x18] sm:%s271]
                %287 = vst [vmem:[%s279 + $0xc] sm:%s271] %v286
              $region61: #{tpu_custom_call.1} parent=55 // loop_footer
                %s277 = sadd.s32 1, %s273
              $region62: #{tpu_custom_call.1} parent=55 // loop_footer_branch
                %272 = sbr.rel target = $region58
              $region63: #{tpu_custom_call.1} parent=55 // loop_exit
                _
            $region56: #{tpu_custom_call.1} parent=47 // pred_fallthru
              _
          $region48: #{tpu_custom_call.1} parent=43 // pred_fallthru
            _
          %316 = vnop
        $region44: #{tpu_custom_call.1} parent=39 // pred_fallthru
          _
      $region40: #{tpu_custom_call.1} parent=5 // pred_fallthru
        _
      %p317 = scmp.le.s32.totalorder 1, %s18
      %p318 = scmp.lt.s32.totalorder %s18, 3
      %p319 = pnand %p317, %p318
      %p320 = pneg %p319
      // Predicated region
      $region82: #{tpu_custom_call.1} parent=5 // pred_check
        _
      $region83: #{tpu_custom_call.1} parent=5 // pred_check_branch
        %322 = sbr.rel (%p319) target = $region85
      $region84: #{tpu_custom_call.1} parent=5 // pred_region
        %s323 = ssub.s32 %s18, 1
        %s324 = sand.u32 %s31, 1
        %s325 = sand.u32 %s31, 1
        %s326 = smul.addr %s325, 16
        %s327 = scalar_lea.vmem [#allocation2], %s326
        // Predicated region
        $region86: #{tpu_custom_call.1} parent=84 // pred_check
          %p328 = pneg %p44
        $region87: #{tpu_custom_call.1} parent=84 // pred_check_branch
          %330 = sbr.rel (%p328) target = $region89
        $region88: #{tpu_custom_call.1} parent=84 // pred_region
          _
        $region89: #{tpu_custom_call.1} parent=84 // pred_fallthru
          _
        // Predicated region
        $region90: #{tpu_custom_call.1} parent=84 // pred_check
          %p331 = pneg %p107
        $region91: #{tpu_custom_call.1} parent=84 // pred_check_branch
          %333 = sbr.rel (%p331) target = $region93
        $region92: #{tpu_custom_call.1} parent=84 // pred_region
          %335 = dma.done [#allocation4], 256
        $region93: #{tpu_custom_call.1} parent=84 // pred_fallthru
          _
        // Predicated region
        $region94: #{tpu_custom_call.1} parent=84 // pred_check
          %p336 = pneg %p149
        $region95: #{tpu_custom_call.1} parent=84 // pred_check_branch
          %338 = sbr.rel (%p336) target = $region97
        $region96: #{tpu_custom_call.1} parent=84 // pred_region
          %340 = dma.done [#allocation7], 256
        $region97: #{tpu_custom_call.1} parent=84 // pred_fallthru
          _
        %s341 = sand.u32 %s31, 1
        %s342 = sand.u32 %s31, 1
        %s343 = smul.addr %s342, 16
        %s344 = scalar_lea.vmem [#allocation2], %s343
        %p345 = pneg %p44
        %p346 = pneg %p41
        %p347 = pneg %p65
        %p348 = pneg %p62
        %p349 = pneg %p86
        %p350 = pneg %p83
        %p351 = pneg %p107
        %p352 = pneg %p104
        %p353 = pneg %p128
        %p354 = pneg %p125
        %p355 = pneg %p149
        %p356 = pneg %p146
        %p357 = pneg %p170
        %p358 = pneg %p167
        %p359 = pneg %p196
        %p360 = pneg %p193
        %s361 = sand.u32 %s183, 1
        %s362 = scalar_lea.sflag [#allocation5], %s361
        %s363 = sand.u32 %s183, 1
        %s364 = smul.addr %s363, 16
        %s365 = scalar_lea.vmem [#allocation8], %s364
        %v366 = vld [vmem:[%s1] sm:$0xff]
        %v367 = vld [vmem:[%s1 + $0x8] sm:$0xff]
        %v368 = vld [vmem:[%s2] sm:$0xff]
        %v369 = vld [vmem:[%s2 + $0x8] sm:$0xff]
        %v370 = vld [vmem:[#allocation3] sm:$0xff]
        %v371 = vld [vmem:[#allocation3 + $0x8] sm:$0xff]
        %v372 = vld [vmem:[%s4] sm:$0xff]
        %v373 = vld [vmem:[%s4 + $0x8] sm:$0xff]
        %v374 = vld [vmem:[#allocation6] sm:$0xff]
        %v375 = vld [vmem:[#allocation6 + $0x8] sm:$0xff]
        %v376 = vld [vmem:[%s6] sm:$0xff]
        %v377 = vld [vmem:[%s6 + $0x8] sm:$0xff]
        %v378 = vld [vmem:[%s327] sm:$0xf]
        %v379 = vld [vmem:[%s327 + $0x4] sm:$0xf]
        %v380 = vunpack.c.l.bf16 %v378
        %v381 = vunpack.c.l.bf16 %v379
        %383 = vset.pattern.permute.xlu0 0
        %384 = vperm.xlu0 %383, %v368
        %v385 = vpop.permute.xlu0 %384
        %388 = vset.pattern.permute.xlu0 0
        %389 = vperm.xlu0 %388, %v369
        %v390 = vpop.permute.xlu0 %389
        %vm392 = vcmask 130048
        %v394 = vsel %vm392, %v366, 0
        %v397 = vsel %vm392, %v367, 0
        %399 = vmatpush.msra.mxu0 0.0
        %400 = vmatpush.msra.mxu0 0.0
        %401 = vmatpush.msra.mxu0 0.0
        %402 = vmatpush.msra.mxu0 0.0
        %403 = vmatpush.msra.mxu0 0.0
        %404 = vmatpush.msra.mxu0 0.0
        %405 = vmatpush.msra.mxu0 0.0
        %406 = vmatpush.msra.mxu0 0.0
        %407 = vmatpush.msra.mxu0 0.0
        %408 = vmatpush.msra.mxu0 0.0
        %409 = vmatpush.msra.mxu0 0.0
        %410 = vmatpush.msra.mxu0 0.0
        %411 = vmatpush.msra.mxu0 0.0
        %412 = vmatpush.msra.mxu0 0.0
        %413 = vmatpush.msra.mxu0 %v381
        %414 = vmatpush.msra.mxu0 %v380
        %415 = vmatmul.f32.gmra.mxu0 %v394
        %v416 = vpop.f32.mrf.mxu0
        %v417 = vadd.f32 %v385, %v416
        %418 = vmatmul.f32.gmra.mxu0 %v397
        %v419 = vpop.f32.mrf.mxu0
        %v420 = vadd.f32 %v390, %v419
        %421 = vdwg.mxu0
        %v422 = vmax.f32 %v417, 0.0
        %v423 = vmax.f32 %v420, 0.0
        %425 = vset.pattern.permute.xlu0 0
        %426 = vperm.xlu0 %425, %v372
        %v427 = vpop.permute.xlu0 %426
        %430 = vset.pattern.permute.xlu0 0
        %431 = vperm.xlu0 %430, %v373
        %v432 = vpop.permute.xlu0 %431
        %v435 = vsel %vm392, %v370, 0
        %v438 = vsel %vm392, %v371, 0
        %440 = vmatpush.msra.mxu0 0.0
        %441 = vmatpush.msra.mxu0 0.0
        %442 = vmatpush.msra.mxu0 0.0
        %443 = vmatpush.msra.mxu0 0.0
        %444 = vmatpush.msra.mxu0 0.0
        %445 = vmatpush.msra.mxu0 0.0
        %446 = vmatpush.msra.mxu0 0.0
        %447 = vmatpush.msra.mxu0 0.0
        %448 = vmatpush.msra.mxu0 0.0
        %449 = vmatpush.msra.mxu0 0.0
        %450 = vmatpush.msra.mxu0 0.0
        %451 = vmatpush.msra.mxu0 0.0
        %452 = vmatpush.msra.mxu0 0.0
        %453 = vmatpush.msra.mxu0 0.0
        %454 = vmatpush.msra.mxu0 %v423
        %455 = vmatpush.msra.mxu0 %v422
        %456 = vmatmul.f32.gmra.mxu0 %v435
        %v457 = vpop.f32.mrf.mxu0
        %v458 = vadd.f32 %v427, %v457
        %459 = vmatmul.f32.gmra.mxu0 %v438
        %v460 = vpop.f32.mrf.mxu0
        %v461 = vadd.f32 %v432, %v460
        %462 = vdwg.mxu0
        %v463 = vmax.f32 %v458, 0.0
        %v464 = vmax.f32 %v461, 0.0
        %466 = vset.pattern.permute.xlu0 0
        %467 = vperm.xlu0 %466, %v376
        %v468 = vpop.permute.xlu0 %467
        %471 = vset.pattern.permute.xlu0 0
        %472 = vperm.xlu0 %471, %v377
        %v473 = vpop.permute.xlu0 %472
        %v476 = vsel %vm392, %v374, 0
        %v479 = vsel %vm392, %v375, 0
        %481 = vmatpush.msra.mxu0 0.0
        %482 = vmatpush.msra.mxu0 0.0
        %483 = vmatpush.msra.mxu0 0.0
        %484 = vmatpush.msra.mxu0 0.0
        %485 = vmatpush.msra.mxu0 0.0
        %486 = vmatpush.msra.mxu0 0.0
        %487 = vmatpush.msra.mxu0 0.0
        %488 = vmatpush.msra.mxu0 0.0
        %489 = vmatpush.msra.mxu0 0.0
        %490 = vmatpush.msra.mxu0 0.0
        %491 = vmatpush.msra.mxu0 0.0
        %492 = vmatpush.msra.mxu0 0.0
        %493 = vmatpush.msra.mxu0 0.0
        %494 = vmatpush.msra.mxu0 0.0
        %495 = vmatpush.msra.mxu0 %v464
        %496 = vmatpush.msra.mxu0 %v463
        %497 = vmatmul.f32.gmra.mxu0 %v476
        %v498 = vpop.f32.mrf.mxu0
        %v499 = vadd.f32 %v468, %v498
        %500 = vmatmul.f32.gmra.mxu0 %v479
        %v501 = vpop.f32.mrf.mxu0
        %v502 = vadd.f32 %v473, %v501
        %503 = vdwg.mxu0
        %v504 = vpack.c.bf16 %v499, %v499
        %v505 = vpack.c.bf16 %v502, %v502
        %506 = vst [vmem:[%s365] sm:$0xf] %v504
        %507 = vst [vmem:[%s365 + $0x4] sm:$0xf] %v505
        %s508 = scalar_lea.vmem %s327, 8 [#allocation2]
        %v509 = vld [vmem:[%s508] sm:$0xf]
        %v510 = vld [vmem:[%s508 + $0x4] sm:$0xf]
        %v511 = vunpack.c.l.bf16 %v509
        %v512 = vunpack.c.l.bf16 %v510
        %513 = vmatpush.msra.mxu0 0.0
        %514 = vmatpush.msra.mxu0 0.0
        %515 = vmatpush.msra.mxu0 0.0
        %516 = vmatpush.msra.mxu0 0.0
        %517 = vmatpush.msra.mxu0 0.0
        %518 = vmatpush.msra.mxu0 0.0
        %519 = vmatpush.msra.mxu0 0.0
        %520 = vmatpush.msra.mxu0 0.0
        %521 = vmatpush.msra.mxu0 0.0
        %522 = vmatpush.msra.mxu0 0.0
        %523 = vmatpush.msra.mxu0 0.0
        %524 = vmatpush.msra.mxu0 0.0
        %525 = vmatpush.msra.mxu0 0.0
        %526 = vmatpush.msra.mxu0 0.0
        %527 = vmatpush.msra.mxu0 %v512
        %528 = vmatpush.msra.mxu0 %v511
        %529 = vmatmul.f32.gmra.mxu0 %v394
        %v530 = vpop.f32.mrf.mxu0
        %v531 = vadd.f32 %v385, %v530
        %532 = vmatmul.f32.gmra.mxu0 %v397
        %v533 = vpop.f32.mrf.mxu0
        %v534 = vadd.f32 %v390, %v533
        %535 = vdwg.mxu0
        %v536 = vmax.f32 %v531, 0.0
        %v537 = vmax.f32 %v534, 0.0
        %538 = vmatpush.msra.mxu0 0.0
        %539 = vmatpush.msra.mxu0 0.0
        %540 = vmatpush.msra.mxu0 0.0
        %541 = vmatpush.msra.mxu0 0.0
        %542 = vmatpush.msra.mxu0 0.0
        %543 = vmatpush.msra.mxu0 0.0
        %544 = vmatpush.msra.mxu0 0.0
        %545 = vmatpush.msra.mxu0 0.0
        %546 = vmatpush.msra.mxu0 0.0
        %547 = vmatpush.msra.mxu0 0.0
        %548 = vmatpush.msra.mxu0 0.0
        %549 = vmatpush.msra.mxu0 0.0
        %550 = vmatpush.msra.mxu0 0.0
        %551 = vmatpush.msra.mxu0 0.0
        %552 = vmatpush.msra.mxu0 %v537
        %553 = vmatpush.msra.mxu0 %v536
        %554 = vmatmul.f32.gmra.mxu0 %v435
        %v555 = vpop.f32.mrf.mxu0
        %v556 = vadd.f32 %v427, %v555
        %557 = vmatmul.f32.gmra.mxu0 %v438
        %v558 = vpop.f32.mrf.mxu0
        %v559 = vadd.f32 %v432, %v558
        %560 = vdwg.mxu0
        %v561 = vmax.f32 %v556, 0.0
        %v562 = vmax.f32 %v559, 0.0
        %563 = vmatpush.msra.mxu0 0.0
        %564 = vmatpush.msra.mxu0 0.0
        %565 = vmatpush.msra.mxu0 0.0
        %566 = vmatpush.msra.mxu0 0.0
        %567 = vmatpush.msra.mxu0 0.0
        %568 = vmatpush.msra.mxu0 0.0
        %569 = vmatpush.msra.mxu0 0.0
        %570 = vmatpush.msra.mxu0 0.0
        %571 = vmatpush.msra.mxu0 0.0
        %572 = vmatpush.msra.mxu0 0.0
        %573 = vmatpush.msra.mxu0 0.0
        %574 = vmatpush.msra.mxu0 0.0
        %575 = vmatpush.msra.mxu0 0.0
        %576 = vmatpush.msra.mxu0 0.0
        %577 = vmatpush.msra.mxu0 %v562
        %578 = vmatpush.msra.mxu0 %v561
        %579 = vmatmul.f32.gmra.mxu0 %v476
        %v580 = vpop.f32.mrf.mxu0
        %v581 = vadd.f32 %v468, %v580
        %582 = vmatmul.f32.gmra.mxu0 %v479
        %v583 = vpop.f32.mrf.mxu0
        %v584 = vadd.f32 %v473, %v583
        %585 = vdwg.mxu0
        %v586 = vpack.c.bf16 %v581, %v581
        %v587 = vpack.c.bf16 %v584, %v584
        %s588 = scalar_lea.vmem %s365, 8 [#allocation8]
        %589 = vst [vmem:[%s588] sm:$0xf] %v586
        %590 = vst [vmem:[%s588 + $0x4] sm:$0xf] %v587
        %s591 = sand.u32 %s183, 1
        %s592 = scalar_lea.sflag [#allocation5], %s591
        %s593 = sand.u32 %s183, 1
        %s594 = smul.addr %s593, 16
        %s595 = scalar_lea.vmem [#allocation8], %s594
        // Predicated region
        $region98: #{tpu_custom_call.1} parent=84 // pred_check
          %p596 = pneg %p193
        $region99: #{tpu_custom_call.1} parent=84 // pred_check_branch
          %598 = sbr.rel (%p596) target = $region101
        $region100: #{tpu_custom_call.1} parent=84 // pred_region
          %600 = vsyncadd %s592, 0
          %s601 = smul.addr %s23, 4
          %s602 = scalar_lea.hbm %s7, %s601
          %s603 = sshll.u32 %s595, 4
          %s604 = int_to_ptr.vmem [resolvable:$true] %s603
          %s605 = sshll.u32 %s602, 4
          %s606 = int_to_ptr.hbm [resolvable:$true] %s605
          %611 = dma.vmem_to_hbm [thread:$0]  %s604, 256, %s606, %s592, 64, 128, 4
        $region101: #{tpu_custom_call.1} parent=84 // pred_fallthru
          _
      $region85: #{tpu_custom_call.1} parent=5 // pred_fallthru
        _
      %p612 = scmp.le.s32.totalorder 2, %s18
      // Predicated region
      $region102: #{tpu_custom_call.1} parent=5 // pred_check
        %p613 = pneg %p612
      $region103: #{tpu_custom_call.1} parent=5 // pred_check_branch
        %615 = sbr.rel (%p613) target = $region105
      $region104: #{tpu_custom_call.1} parent=5 // pred_region
        %s616 = ssub.s32 %s18, 2
        // Predicated region
        $region106: #{tpu_custom_call.1} parent=104 // pred_check
          %p617 = pneg %p199
        $region107: #{tpu_custom_call.1} parent=104 // pred_check_branch
          %619 = sbr.rel (%p617) target = $region109
        $region108: #{tpu_custom_call.1} parent=104 // pred_region
          %s620 = sand.u32 %s184, 1
          %s621 = scalar_lea.sflag [#allocation5], %s620
          %s622 = sand.u32 %s184, 1
          %s623 = smul.addr %s622, 16
          %s624 = scalar_lea.vmem [#allocation8], %s623
          %626 = dma.done %s621, 256
        $region109: #{tpu_custom_call.1} parent=104 // pred_fallthru
          _
      $region105: #{tpu_custom_call.1} parent=5 // pred_fallthru
        _
    $region6: #{tpu_custom_call.1} parent=1 // loop_footer
      %s22 = sadd.s32 1, %s18
    $region7: #{tpu_custom_call.1} parent=1 // loop_footer_branch
      %17 = sbr.rel target = $region3
    $region8: #{tpu_custom_call.1} parent=1 // loop_exit
      _
    %627 = vsyncpa [#allocation4], 1
    %s628 = scalar_lea.sflag [#allocation4], 1
    %629 = vsyncpa %s628, 1
    %630 = vsyncpa [#allocation7], 1
    %631 = vsyncpa [#allocation5], 1
    %s632 = scalar_lea.sflag [#allocation5], 1
    %633 = vsyncpa %s632, 1

</llo_original>
